<compile_context>
chip_gen: v7x
topology: tpu7x:2x2x1
jax: 0.10.0
libtpu: 0.0.40
codegen_flags: <defaults>
</compile_context>

<pallas_src>
import functools
import math

import jax
import jax.numpy as jnp
from jax.experimental import pallas as pl
from jax.experimental.pallas import tpu as pltpu


# -----------------------------------------------------------------------------
# Fused Pallas kernel: whole MPNN forward in one launch
# -----------------------------------------------------------------------------
def _mpnn_fused_kernel(a_ref, x_ref, w1_ref, w2_ref, fc1w_ref, vec_ref,
                       f2wp_ref, o_ref, *, nfeat, nhid):
    f32 = jnp.float32

    a = a_ref[...]
    x = x_ref[...]

    # --- GCN normalization from a single degree vector (row sums of A+I).
    # rsqrt computed once; D^-1/2 (A+I) D^-1/2 @ M is applied in factored form
    #   d_inv * (A @ (d_inv * M))
    # so A_norm is never materialized and no transpose / column reduction is
    # needed. This also matches gcn_norm exactly for asymmetric adjacencies.
    deg = jnp.sum(a, axis=1, keepdims=True)                       # (N, 1)
    d_inv = jax.lax.rsqrt(jnp.maximum(deg, 1e-12))                # (N, 1)

    # --- packed per-channel vectors: one (8, 128) operand (a single vreg),
    # rows read with static slices.
    b1 = vec_ref[0:1, :nhid]
    s1 = vec_ref[1:2, :nhid]
    t1 = vec_ref[2:3, :nhid]
    b2 = vec_ref[3:4, :nhid]
    s2 = vec_ref[4:5, :nhid]
    t2 = vec_ref[5:6, :nhid]
    fb1 = vec_ref[6:7, :nhid]
    f2b = vec_ref[7:8, :]        # fc2 bias, already padded to full lane width

    # --- layer 1: BN1(relu((A_norm @ X) @ W1 + b1))   (reassociated: nfeat < nhid)
    ax = d_inv * jnp.dot(a, d_inv * x, preferred_element_type=f32)
    h = jnp.dot(ax, w1_ref[...], preferred_element_type=f32) + b1
    h1 = jnp.maximum(h, 0.0) * s1 + t1

    # --- layer 2: BN2(relu(A_norm @ (H1 @ W2) + b2))
    hw = jnp.dot(h1, w2_ref[...], preferred_element_type=f32)
    h = d_inv * jnp.dot(a, d_inv * hw, preferred_element_type=f32) + b2
    h2 = jnp.maximum(h, 0.0) * s2 + t2

    # --- fc1 over concat([x, h1, h2], dim=1) as split-weight matmuls; the
    # weight is sliced in-kernel with static, 8-aligned row slices (free).
    z = (jnp.dot(x, fc1w_ref[0:nfeat, :], preferred_element_type=f32)
         + jnp.dot(h1, fc1w_ref[nfeat:nfeat + nhid, :], preferred_element_type=f32)
         + jnp.dot(h2, fc1w_ref[nfeat + nhid:, :], preferred_element_type=f32)
         + fb1)
    z = jnp.maximum(z, 0.0)

    # --- fc2 + relu; output columns are padded to the full 128-lane width so
    # the single store is lane-dense (unmasked vst).
    o = jnp.dot(z, f2wp_ref[...], preferred_element_type=f32) + f2b
    o_ref[...] = jnp.maximum(o, 0.0)


def mpnn_forward(params, a_hat, x):
    """Fused MPNN forward.  a_hat = dense (A + I) with edge weights."""
    N, nfeat = x.shape
    nhid = params["gcn1_w"].shape[1]
    nout = params["fc2_w"].shape[1]
    f32 = jnp.float32

    # Lane-dense width for the packed vectors and the fc2 output columns.
    lane_w = max(128, ((max(nhid, nout) + 127) // 128) * 128)

    # Pack the eight tiny per-channel vectors into a single (8, lane_w) operand.
    vecs = jnp.zeros((8, lane_w), f32)
    vecs = vecs.at[0, :nhid].set(params["gcn1_b"])
    vecs = vecs.at[1, :nhid].set(params["bn1_scale"])
    vecs = vecs.at[2, :nhid].set(params["bn1_shift"])
    vecs = vecs.at[3, :nhid].set(params["gcn2_b"])
    vecs = vecs.at[4, :nhid].set(params["bn2_scale"])
    vecs = vecs.at[5, :nhid].set(params["bn2_shift"])
    vecs = vecs.at[6, :nhid].set(params["fc1_b"])
    vecs = vecs.at[7, :nout].set(params["fc2_b"])

    # fc2 weight padded to full lane width for an unmasked final store; the
    # real columns are sliced back out below.
    f2w_pad = jnp.zeros((nhid, lane_w), f32).at[:, :nout].set(params["fc2_w"])

    kernel = functools.partial(_mpnn_fused_kernel, nfeat=nfeat, nhid=nhid)

    # TODO(synk): scaling note — at these sizes everything is VMEM-resident
    # with no grid (and, since there is no pipeline, no double-buffering of
    # the dense (N,N) adjacency). If N grows: raise vmem_limit_bytes via
    # pltpu.CompilerParams (v6e can hold the dense f32 adjacency untiled to
    # ~4k nodes once the ~32 MiB scoped default is lifted); on v7x (64 MiB
    # physical, 2 TCs) cast the dot operands to bf16 and add a "parallel"
    # row-tile grid axis; on v5e use 128-multiple row/col tiles and keep the
    # same adjacency tile resident across both GCN layers to stay off HBM.
    vmem_spec = pl.BlockSpec(memory_space=pltpu.MemorySpace.VMEM)

    out = pl.pallas_call(
        kernel,
        out_shape=jax.ShapeDtypeStruct((N, lane_w), f32),
        in_specs=[vmem_spec] * 7,
        out_specs=vmem_spec,
    )(a_hat, x, params["gcn1_w"], params["gcn2_w"], params["fc1_w"],
      vecs, f2w_pad)

    # relu(fc2(x)).squeeze(); x.view(-1)  (drop lane padding added for the store)
    return out[:, :nout].reshape(-1)


# -----------------------------------------------------------------------------
# Pure-JAX reference (for a correctness cross-check)
# -----------------------------------------------------------------------------
def mpnn_reference(params, a_hat, x):
    deg = jnp.sum(a_hat, axis=1)
    dinv = jax.lax.rsqrt(jnp.maximum(deg, 1e-12))
    a_norm = a_hat * dinv[:, None] * dinv[None, :]
    h1 = jnp.maximum(a_norm @ (x @ params["gcn1_w"]) + params["gcn1_b"], 0.0)
    h1 = h1 * params["bn1_scale"] + params["bn1_shift"]
    h2 = jnp.maximum(a_norm @ (h1 @ params["gcn2_w"]) + params["gcn2_b"], 0.0)
    h2 = h2 * params["bn2_scale"] + params["bn2_shift"]
    cat = jnp.concatenate([x, h1, h2], axis=1)
    z = jnp.maximum(cat @ params["fc1_w"] + params["fc1_b"], 0.0)
    o = jnp.maximum(z @ params["fc2_w"] + params["fc2_b"], 0.0)
    return o.reshape(-1)


# -----------------------------------------------------------------------------
# Deterministic synthetic parameters (shapes follow the module __init__)
# -----------------------------------------------------------------------------
def init_params(key, nfeat, nhid, nout):
    ks = iter(jax.random.split(key, 32))

    def lin(fi, fo):
        lim = 1.0 / math.sqrt(fi)
        w = jax.random.uniform(next(ks), (fi, fo), jnp.float32, -lim, lim)
        b = jax.random.uniform(next(ks), (fo,), jnp.float32, -lim, lim)
        return w, b

    p = {}
    p["gcn1_w"], p["gcn1_b"] = lin(nfeat, nhid)
    p["gcn2_w"], p["gcn2_b"] = lin(nhid, nhid)
    for i in (1, 2):  # BatchNorm1d(nhid) in eval mode, folded into scale/shift
        g = jax.random.uniform(next(ks), (nhid,), jnp.float32, 0.5, 1.5)
        beta = 0.1 * jax.random.normal(next(ks), (nhid,), jnp.float32)
        rm = 0.1 * jax.random.normal(next(ks), (nhid,), jnp.float32)
        rv = jax.random.uniform(next(ks), (nhid,), jnp.float32, 0.5, 1.5)
        scale = g * jax.lax.rsqrt(rv + 1e-5)
        p[f"bn{i}_scale"] = scale
        p[f"bn{i}_shift"] = beta - rm * scale
    p["fc1_w"], p["fc1_b"] = lin(nfeat + 2 * nhid, nhid)   # fc1
    p["fc2_w"], p["fc2_b"] = lin(nhid, nout)               # fc2
    return p


# -----------------------------------------------------------------------------
if __name__ == "__main__":
    nfeat, nhid, nout = 8, 32, 1
    N = 64                                   # number of graph nodes

    key = jax.random.PRNGKey(0)
    k_x, k_w, k_p = jax.random.split(key, 3)

    x = jax.random.normal(k_x, (N, nfeat), jnp.float32)

    # Sparse symmetric COO adjacency (ring graph) with random edge weights.
    # TODO(synk): the COO -> dense scatter (adj.coalesce equivalent) has no
    # clean data-dependent-scatter Pallas equivalent on TPU; it is built once
    # in XLA glue. The self-loop add and D^-1/2 normalization are fused into
    # the Pallas kernel.
    src = jnp.arange(N, dtype=jnp.int32)
    dst = (src + 1) % N
    ew = jax.random.uniform(k_w, (N,), jnp.float32, 0.5, 1.5)
    a = jnp.zeros((N, N), jnp.float32)
    a = a.at[src, dst].add(ew)
    a = a.at[dst, src].add(ew)
    a_hat = a + jnp.eye(N, dtype=jnp.float32)     # A + I (self-loops)

    params = init_params(k_p, nfeat, nhid, nout)

    fwd = jax.jit(mpnn_forward)
    out = jax.block_until_ready(fwd(params, a_hat, x))

    ref = mpnn_reference(params, a_hat, x)
    assert out.shape == (N * nout,), out.shape
    assert bool(jnp.all(jnp.isfinite(out)))
    assert bool(jnp.allclose(out, ref, rtol=1e-3, atol=1e-3)), \
        float(jnp.max(jnp.abs(out - ref)))
    print("KERNEL_OK")
</pallas_src>

<mosaic_0001>
module attributes {stable_mosaic.version = 11 : i64} {
  func.func @_mpnn_fused_kernel(%arg0: memref<64x64xf32, #tpu.memory_space<vmem>>, %arg1: memref<64x8xf32, #tpu.memory_space<vmem>>, %arg2: memref<8x32xf32, #tpu.memory_space<vmem>>, %arg3: memref<32x32xf32, #tpu.memory_space<vmem>>, %arg4: memref<72x32xf32, #tpu.memory_space<vmem>>, %arg5: memref<8x128xf32, #tpu.memory_space<vmem>>, %arg6: memref<32x128xf32, #tpu.memory_space<vmem>>, %arg7: memref<64x128xf32, #tpu.memory_space<vmem>>) attributes {dimension_semantics = [], scalar_prefetch = 0 : i64, scratch_operands = 0 : i64, tpu.core_type = #tpu.core_type<tc>} {
    %c0 = arith.constant 0 : index
    %c0_0 = arith.constant 0 : index
    %0 = vector.load %arg0[%c0, %c0_0] : memref<64x64xf32, #tpu.memory_space<vmem>>, vector<64x64xf32>
    %c0_1 = arith.constant 0 : index
    %c0_2 = arith.constant 0 : index
    %1 = vector.load %arg1[%c0_1, %c0_2] : memref<64x8xf32, #tpu.memory_space<vmem>>, vector<64x8xf32>
    %cst = arith.constant dense<0.000000e+00> : vector<64xf32>
    %2 = vector.multi_reduction <add>, %0, %cst [1] : vector<64x64xf32> to vector<64xf32>
    %3 = vector.shape_cast %2 : vector<64xf32> to vector<64x1xf32>
    %cst_3 = arith.constant 9.99999996E-13 : f32
    %4 = vector.broadcast %cst_3 : f32 to vector<64x1xf32>
    %5 = arith.maximumf %3, %4 : vector<64x1xf32>
    %6 = math.rsqrt %5 : vector<64x1xf32>
    %c0_4 = arith.constant 0 : index
    %c0_5 = arith.constant 0 : index
    %7 = vector.load %arg5[%c0_4, %c0_5] : memref<8x128xf32, #tpu.memory_space<vmem>>, vector<1x32xf32>
    %c1 = arith.constant 1 : index
    %c0_6 = arith.constant 0 : index
    %8 = vector.load %arg5[%c1, %c0_6] : memref<8x128xf32, #tpu.memory_space<vmem>>, vector<1x32xf32>
    %c2 = arith.constant 2 : index
    %c0_7 = arith.constant 0 : index
    %9 = vector.load %arg5[%c2, %c0_7] : memref<8x128xf32, #tpu.memory_space<vmem>>, vector<1x32xf32>
    %c3 = arith.constant 3 : index
    %c0_8 = arith.constant 0 : index
    %10 = vector.load %arg5[%c3, %c0_8] : memref<8x128xf32, #tpu.memory_space<vmem>>, vector<1x32xf32>
    %c4 = arith.constant 4 : index
    %c0_9 = arith.constant 0 : index
    %11 = vector.load %arg5[%c4, %c0_9] : memref<8x128xf32, #tpu.memory_space<vmem>>, vector<1x32xf32>
    %c5 = arith.constant 5 : index
    %c0_10 = arith.constant 0 : index
    %12 = vector.load %arg5[%c5, %c0_10] : memref<8x128xf32, #tpu.memory_space<vmem>>, vector<1x32xf32>
    %c6 = arith.constant 6 : index
    %c0_11 = arith.constant 0 : index
    %13 = vector.load %arg5[%c6, %c0_11] : memref<8x128xf32, #tpu.memory_space<vmem>>, vector<1x32xf32>
    %c7 = arith.constant 7 : index
    %c0_12 = arith.constant 0 : index
    %14 = vector.load %arg5[%c7, %c0_12] : memref<8x128xf32, #tpu.memory_space<vmem>>, vector<1x128xf32>
    %15 = vector.broadcast %6 : vector<64x1xf32> to vector<64x8xf32>
    %16 = arith.mulf %15, %1 : vector<64x8xf32>
    %cst_13 = arith.constant dense<0.000000e+00> : vector<64x8xf32>
    %17 = tpu.matmul %0, %16, %cst_13 {dimension_numbers = #tpu.dot_dimension_numbers<[1], [0], [0], [1], [0, 0, 1, 1], [], []>} : vector<64x64xf32>, vector<64x8xf32>, vector<64x8xf32> -> vector<64x8xf32>
    %18 = vector.broadcast %6 : vector<64x1xf32> to vector<64x8xf32>
    %19 = arith.mulf %18, %17 : vector<64x8xf32>
    %c0_14 = arith.constant 0 : index
    %c0_15 = arith.constant 0 : index
    %20 = vector.load %arg2[%c0_14, %c0_15] : memref<8x32xf32, #tpu.memory_space<vmem>>, vector<8x32xf32>
    %cst_16 = arith.constant dense<0.000000e+00> : vector<64x32xf32>
    %21 = tpu.matmul %19, %20, %cst_16 {dimension_numbers = #tpu.dot_dimension_numbers<[1], [0], [0], [1], [0, 0, 1, 1], [], []>} : vector<64x8xf32>, vector<8x32xf32>, vector<64x32xf32> -> vector<64x32xf32>
    %22 = vector.broadcast %7 : vector<1x32xf32> to vector<64x32xf32>
    %23 = arith.addf %21, %22 : vector<64x32xf32>
    %cst_17 = arith.constant 0.000000e+00 : f32
    %24 = vector.broadcast %cst_17 : f32 to vector<64x32xf32>
    %25 = arith.maximumf %23, %24 : vector<64x32xf32>
    %26 = vector.broadcast %8 : vector<1x32xf32> to vector<64x32xf32>
    %27 = arith.mulf %25, %26 : vector<64x32xf32>
    %28 = vector.broadcast %9 : vector<1x32xf32> to vector<64x32xf32>
    %29 = arith.addf %27, %28 : vector<64x32xf32>
    %c0_18 = arith.constant 0 : index
    %c0_19 = arith.constant 0 : index
    %30 = vector.load %arg3[%c0_18, %c0_19] : memref<32x32xf32, #tpu.memory_space<vmem>>, vector<32x32xf32>
    %cst_20 = arith.constant dense<0.000000e+00> : vector<64x32xf32>
    %31 = tpu.matmul %29, %30, %cst_20 {dimension_numbers = #tpu.dot_dimension_numbers<[1], [0], [0], [1], [0, 0, 1, 1], [], []>} : vector<64x32xf32>, vector<32x32xf32>, vector<64x32xf32> -> vector<64x32xf32>
    %32 = vector.broadcast %6 : vector<64x1xf32> to vector<64x32xf32>
    %33 = arith.mulf %32, %31 : vector<64x32xf32>
    %cst_21 = arith.constant dense<0.000000e+00> : vector<64x32xf32>
    %34 = tpu.matmul %0, %33, %cst_21 {dimension_numbers = #tpu.dot_dimension_numbers<[1], [0], [0], [1], [0, 0, 1, 1], [], []>} : vector<64x64xf32>, vector<64x32xf32>, vector<64x32xf32> -> vector<64x32xf32>
    %35 = vector.broadcast %6 : vector<64x1xf32> to vector<64x32xf32>
    %36 = arith.mulf %35, %34 : vector<64x32xf32>
    %37 = vector.broadcast %10 : vector<1x32xf32> to vector<64x32xf32>
    %38 = arith.addf %36, %37 : vector<64x32xf32>
    %cst_22 = arith.constant 0.000000e+00 : f32
    %39 = vector.broadcast %cst_22 : f32 to vector<64x32xf32>
    %40 = arith.maximumf %38, %39 : vector<64x32xf32>
    %41 = vector.broadcast %11 : vector<1x32xf32> to vector<64x32xf32>
    %42 = arith.mulf %40, %41 : vector<64x32xf32>
    %43 = vector.broadcast %12 : vector<1x32xf32> to vector<64x32xf32>
    %44 = arith.addf %42, %43 : vector<64x32xf32>
    %c0_23 = arith.constant 0 : index
    %c0_24 = arith.constant 0 : index
    %45 = vector.load %arg4[%c0_23, %c0_24] : memref<72x32xf32, #tpu.memory_space<vmem>>, vector<8x32xf32>
    %cst_25 = arith.constant dense<0.000000e+00> : vector<64x32xf32>
    %46 = tpu.matmul %1, %45, %cst_25 {dimension_numbers = #tpu.dot_dimension_numbers<[1], [0], [0], [1], [0, 0, 1, 1], [], []>} : vector<64x8xf32>, vector<8x32xf32>, vector<64x32xf32> -> vector<64x32xf32>
    %c8 = arith.constant 8 : index
    %c0_26 = arith.constant 0 : index
    %47 = vector.load %arg4[%c8, %c0_26] : memref<72x32xf32, #tpu.memory_space<vmem>>, vector<32x32xf32>
    %cst_27 = arith.constant dense<0.000000e+00> : vector<64x32xf32>
    %48 = tpu.matmul %29, %47, %cst_27 {dimension_numbers = #tpu.dot_dimension_numbers<[1], [0], [0], [1], [0, 0, 1, 1], [], []>} : vector<64x32xf32>, vector<32x32xf32>, vector<64x32xf32> -> vector<64x32xf32>
    %49 = arith.addf %46, %48 : vector<64x32xf32>
    %c40 = arith.constant 40 : index
    %c0_28 = arith.constant 0 : index
    %50 = vector.load %arg4[%c40, %c0_28] : memref<72x32xf32, #tpu.memory_space<vmem>>, vector<32x32xf32>
    %cst_29 = arith.constant dense<0.000000e+00> : vector<64x32xf32>
    %51 = tpu.matmul %44, %50, %cst_29 {dimension_numbers = #tpu.dot_dimension_numbers<[1], [0], [0], [1], [0, 0, 1, 1], [], []>} : vector<64x32xf32>, vector<32x32xf32>, vector<64x32xf32> -> vector<64x32xf32>
    %52 = arith.addf %49, %51 : vector<64x32xf32>
    %53 = vector.broadcast %13 : vector<1x32xf32> to vector<64x32xf32>
    %54 = arith.addf %52, %53 : vector<64x32xf32>
    %cst_30 = arith.constant 0.000000e+00 : f32
    %55 = vector.broadcast %cst_30 : f32 to vector<64x32xf32>
    %56 = arith.maximumf %54, %55 : vector<64x32xf32>
    %c0_31 = arith.constant 0 : index
    %c0_32 = arith.constant 0 : index
    %57 = vector.load %arg6[%c0_31, %c0_32] : memref<32x128xf32, #tpu.memory_space<vmem>>, vector<32x128xf32>
    %cst_33 = arith.constant dense<0.000000e+00> : vector<64x128xf32>
    %58 = tpu.matmul %56, %57, %cst_33 {dimension_numbers = #tpu.dot_dimension_numbers<[1], [0], [0], [1], [0, 0, 1, 1], [], []>} : vector<64x32xf32>, vector<32x128xf32>, vector<64x128xf32> -> vector<64x128xf32>
    %59 = vector.broadcast %14 : vector<1x128xf32> to vector<64x128xf32>
    %60 = arith.addf %58, %59 : vector<64x128xf32>
    %cst_34 = arith.constant 0.000000e+00 : f32
    %61 = vector.broadcast %cst_34 : f32 to vector<64x128xf32>
    %62 = arith.maximumf %60, %61 : vector<64x128xf32>
    %c0_35 = arith.constant 0 : index
    %c0_36 = arith.constant 0 : index
    %63 = vector.load %arg7[%c0_35, %c0_36] : memref<64x128xf32, #tpu.memory_space<vmem>>, vector<64x128xf32>
    tpu.vector_store %arg7[%c0_35, %c0_36], %62 {strides = array<i32>} : memref<64x128xf32, #tpu.memory_space<vmem>>, vector<64x128xf32>,
    return
  }
}

</mosaic_0001>

<llo_original>
// kernel: mpnn_forward.1
$region0: #{mpnn_forward.1}
  #allocation0 [shape = 'u32[]', space=smem, size = 0x4, offset = 0x4, fixed_abs, tag = 'smem constant byte address 0x4 - core index']
  #allocation1 [shape = 'u32[144,128]{1,0:T(1,128)}', space=vmem, size = 0x12000, scoped, tag = 'internal scratch']
  %s0 = inlined_call_operand.vmem [shape: f32[64,64], index: 0, kind: input, shape index: {}]
  %s1 = inlined_call_operand.vmem [shape: f32[64,8], index: 1, kind: input, shape index: {}]
  %s2 = inlined_call_operand.vmem [shape: f32[8,32], index: 2, kind: input, shape index: {}]
  %s3 = inlined_call_operand.vmem [shape: f32[32,32], index: 3, kind: input, shape index: {}]
  %s4 = inlined_call_operand.vmem [shape: f32[72,32], index: 4, kind: input, shape index: {}]
  %s5 = inlined_call_operand.vmem [shape: f32[8,128], index: 5, kind: input, shape index: {}]
  %s6 = inlined_call_operand.vmem [shape: f32[32,128], index: 6, kind: input, shape index: {}]
  %s7 = inlined_call_operand.vmem [shape: f32[64,128], index: 7, kind: output, shape index: {}]
  %s8 = sld [smem:[#allocation0]]
  $region38: #{mpnn_forward.1} parent=0
    _
  %s10 = ssub.s32 1, %s8
  %s11 = scalar_select 0, %s10, %s8
  // Predicated region
  $region2: #{mpnn_forward.1} parent=0 // pred_check
    _
  $region3: #{mpnn_forward.1} parent=0 // pred_check_branch
    %13 = sbr.rel (0) target = $region5
  $region4: #{mpnn_forward.1} parent=0 // pred_region
    _
  $region5: #{mpnn_forward.1} parent=0 // pred_fallthru
    _
  // Predicated region
  $region6: #{mpnn_forward.1} parent=0 // pred_check
    _
  $region7: #{mpnn_forward.1} parent=0 // pred_check_branch
    %15 = sbr.rel (0) target = $region9
  $region8: #{mpnn_forward.1} parent=0 // pred_region
    _
  $region9: #{mpnn_forward.1} parent=0 // pred_fallthru
    _
  // Predicated region
  $region10: #{mpnn_forward.1} parent=0 // pred_check
    _
  $region11: #{mpnn_forward.1} parent=0 // pred_check_branch
    %17 = sbr.rel (0) target = $region13
  $region12: #{mpnn_forward.1} parent=0 // pred_region
    _
  $region13: #{mpnn_forward.1} parent=0 // pred_fallthru
    _
  // Predicated region
  $region14: #{mpnn_forward.1} parent=0 // pred_check
    _
  $region15: #{mpnn_forward.1} parent=0 // pred_check_branch
    %19 = sbr.rel (0) target = $region17
  $region16: #{mpnn_forward.1} parent=0 // pred_region
    _
  $region17: #{mpnn_forward.1} parent=0 // pred_fallthru
    _
  // Predicated region
  $region18: #{mpnn_forward.1} parent=0 // pred_check
    _
  $region19: #{mpnn_forward.1} parent=0 // pred_check_branch
    %21 = sbr.rel (0) target = $region21
  $region20: #{mpnn_forward.1} parent=0 // pred_region
    _
  $region21: #{mpnn_forward.1} parent=0 // pred_fallthru
    _
  // Predicated region
  $region22: #{mpnn_forward.1} parent=0 // pred_check
    _
  $region23: #{mpnn_forward.1} parent=0 // pred_check_branch
    %23 = sbr.rel (0) target = $region25
  $region24: #{mpnn_forward.1} parent=0 // pred_region
    _
  $region25: #{mpnn_forward.1} parent=0 // pred_fallthru
    _
  // Predicated region
  $region26: #{mpnn_forward.1} parent=0 // pred_check
    _
  $region27: #{mpnn_forward.1} parent=0 // pred_check_branch
    %25 = sbr.rel (0) target = $region29
  $region28: #{mpnn_forward.1} parent=0 // pred_region
    _
  $region29: #{mpnn_forward.1} parent=0 // pred_fallthru
    _
  %v26 = vld [vmem:[%s0] sm:$0xff]
  %v27 = vld [vmem:[%s0 + $0x8] sm:$0xff]
  %v28 = vld [vmem:[%s0 + $0x10] sm:$0xff]
  %v29 = vld [vmem:[%s0 + $0x18] sm:$0xff]
  %v30 = vld [vmem:[%s0 + $0x20] sm:$0xff]
  %v31 = vld [vmem:[%s0 + $0x28] sm:$0xff]
  %v32 = vld [vmem:[%s0 + $0x30] sm:$0xff]
  %v33 = vld [vmem:[%s0 + $0x38] sm:$0xff]
  %v34 = vld [vmem:[%s1] sm:$0xff]
  %v35 = vld [vmem:[%s1 + $0x8] sm:$0xff]
  %v36 = vld [vmem:[%s1 + $0x10] sm:$0xff]
  %v37 = vld [vmem:[%s1 + $0x18] sm:$0xff]
  %v38 = vld [vmem:[%s1 + $0x20] sm:$0xff]
  %v39 = vld [vmem:[%s1 + $0x28] sm:$0xff]
  %v40 = vld [vmem:[%s1 + $0x30] sm:$0xff]
  %v41 = vld [vmem:[%s1 + $0x38] sm:$0xff]
  %vm42 = vcmask 523264
  %v43 = vsel %vm42, %v26, 0.0
  %44 = vadd.xlane.f32.xlu0 %v43
  %v45 = vpop.xlane.xlu0 %44
  %v46 = vsel %vm42, %v27, 0.0
  %47 = vadd.xlane.f32.xlu0 %v46
  %v48 = vpop.xlane.xlu0 %47
  %v49 = vsel %vm42, %v28, 0.0
  %50 = vadd.xlane.f32.xlu0 %v49
  %v51 = vpop.xlane.xlu0 %50
  %v52 = vsel %vm42, %v29, 0.0
  %53 = vadd.xlane.f32.xlu0 %v52
  %v54 = vpop.xlane.xlu0 %53
  %v55 = vsel %vm42, %v30, 0.0
  %56 = vadd.xlane.f32.xlu0 %v55
  %v57 = vpop.xlane.xlu0 %56
  %v58 = vsel %vm42, %v31, 0.0
  %59 = vadd.xlane.f32.xlu0 %v58
  %v60 = vpop.xlane.xlu0 %59
  %v61 = vsel %vm42, %v32, 0.0
  %62 = vadd.xlane.f32.xlu0 %v61
  %v63 = vpop.xlane.xlu0 %62
  %v64 = vsel %vm42, %v33, 0.0
  %65 = vadd.xlane.f32.xlu0 %v64
  %v66 = vpop.xlane.xlu0 %65
  %v67 = vmax.f32 %v45, 1e-12
  %v68 = vmax.f32 %v48, 1e-12
  %v69 = vmax.f32 %v51, 1e-12
  %v70 = vmax.f32 %v54, 1e-12
  %v71 = vmax.f32 %v57, 1e-12
  %v72 = vmax.f32 %v60, 1e-12
  %v73 = vmax.f32 %v63, 1e-12
  %v74 = vmax.f32 %v66, 1e-12
  %v75 = vrsqrt.pop %v67
  %v76 = vrsqrt.pop %v68
  %v77 = vrsqrt.pop %v69
  %v78 = vrsqrt.pop %v70
  %v79 = vrsqrt.pop %v71
  %v80 = vrsqrt.pop %v72
  %v81 = vrsqrt.pop %v73
  %v82 = vrsqrt.pop %v74
  %v83 = vld [vmem:[%s5] sm:$0x1]
  %v84 = vld [vmem:[%s5 + $0x1] sm:$0x1]
  %v85 = vld [vmem:[%s5 + $0x2] sm:$0x1]
  %v86 = vld [vmem:[%s5 + $0x3] sm:$0x1]
  %v87 = vld [vmem:[%s5 + $0x4] sm:$0x1]
  %v88 = vld [vmem:[%s5 + $0x5] sm:$0x1]
  %v89 = vld [vmem:[%s5 + $0x6] sm:$0x1]
  %v90 = vld [vmem:[%s5 + $0x7] sm:$0x1]
  %v91 = vmul.f32 %v75, %v34
  %v92 = vmul.f32 %v76, %v35
  %v93 = vmul.f32 %v77, %v36
  %v94 = vmul.f32 %v78, %v37
  %v95 = vmul.f32 %v79, %v38
  %v96 = vmul.f32 %v80, %v39
  %v97 = vmul.f32 %v81, %v40
  %v98 = vmul.f32 %v82, %v41
  %v100 = vsel %vm42, %v26, 0
  %v103 = vsel %vm42, %v27, 0
  %v106 = vsel %vm42, %v28, 0
  %v109 = vsel %vm42, %v29, 0
  %v112 = vsel %vm42, %v30, 0
  %v115 = vsel %vm42, %v31, 0
  %v118 = vsel %vm42, %v32, 0
  %v121 = vsel %vm42, %v33, 0
  %123 = vmatprep.subr.mxu0 0.0
  %124 = vmatpush1.msra.mxu0 %v91
  %125 = vmatprep.subr.mxu0 0.0
  %126 = vmatpush1.msra.mxu0 %v92
  %127 = vmatprep.subr.mxu0 0.0
  %128 = vmatpush1.msra.mxu0 %v93
  %129 = vmatprep.subr.mxu0 0.0
  %130 = vmatpush1.msra.mxu0 %v94
  %131 = vmatprep.subr.mxu0 0.0
  %132 = vmatpush1.msra.mxu0 %v95
  %133 = vmatprep.subr.mxu0 0.0
  %134 = vmatpush1.msra.mxu0 %v96
  %135 = vmatprep.subr.mxu0 0.0
  %136 = vmatpush1.msra.mxu0 %v97
  %137 = vmatprep.subr.mxu0 0.0
  %138 = vmatpush1.msra.mxu0 %v98
  %139 = vmatprep.subr.mxu0 0.0
  %140 = vmatpush1.msra.mxu0 0.0
  %141 = vmatprep.subr.mxu0 0.0
  %142 = vmatpush1.msra.mxu0 0.0
  %143 = vmatprep.subr.mxu0 0.0
  %144 = vmatpush1.msra.mxu0 0.0
  %145 = vmatprep.subr.mxu0 0.0
  %146 = vmatpush1.msra.mxu0 0.0
  %147 = vmatprep.subr.mxu0 0.0
  %148 = vmatpush1.msra.mxu0 0.0
  %149 = vmatprep.subr.mxu0 0.0
  %150 = vmatpush1.msra.mxu0 0.0
  %151 = vmatprep.subr.mxu0 0.0
  %152 = vmatpush1.msra.mxu0 0.0
  %153 = vmatprep.subr.mxu0 0.0
  %154 = vmatpush1.msra.mxu0 0.0
  %155 = vmatprep.subr.mxu0 0.0
  %156 = vmatpush1.msra.mxu0 0.0
  %157 = vmatprep.subr.mxu0 0.0
  %158 = vmatpush1.msra.mxu0 0.0
  %159 = vmatprep.subr.mxu0 0.0
  %160 = vmatpush1.msra.mxu0 0.0
  %161 = vmatprep.subr.mxu0 0.0
  %162 = vmatpush1.msra.mxu0 0.0
  %163 = vmatprep.subr.mxu0 0.0
  %164 = vmatpush1.msra.mxu0 0.0
  %165 = vmatprep.subr.mxu0 0.0
  %166 = vmatpush1.msra.mxu0 0.0
  %167 = vmatprep.subr.mxu0 0.0
  %168 = vmatpush1.msra.mxu0 0.0
  %169 = vmatprep.subr.mxu0 0.0
  %170 = vmatpush1.msra.mxu0 0.0
  %171 = vmatprep.subr.mxu0 0.0
  %172 = vmatpush1.msra.mxu0 0.0
  %173 = vmatprep.subr.mxu0 0.0
  %174 = vmatpush1.msra.mxu0 0.0
  %175 = vmatprep.subr.mxu0 0.0
  %176 = vmatpush1.msra.mxu0 0.0
  %177 = vmatprep.subr.mxu0 0.0
  %178 = vmatpush1.msra.mxu0 0.0
  %179 = vmatprep.subr.mxu0 0.0
  %180 = vmatpush1.msra.mxu0 0.0
  %181 = vmatprep.subr.mxu0 0.0
  %182 = vmatpush1.msra.mxu0 0.0
  %183 = vmatprep.subr.mxu0 0.0
  %184 = vmatpush1.msra.mxu0 0.0
  %185 = vmatprep.subr.mxu0 0.0
  %186 = vmatpush1.msra.mxu0 0.0
  %187 = vmatprep.mubr.f32.mxu0 0.0
  %188 = vmatmul.mubr.f32.gmra.mrb[0].mxu0 %v100
  %v189 = vpop.f32.mrb[0].mxu0
  %v190 = vadd.f32 0.0, %v189
  %v191 = vpop.f32.mrb[0].mxu0
  %192 = vmatprep.mubr.f32.mxu0 0.0
  %193 = vmatmul.mubr.f32.gmra.mrb[0].mxu0 %v103
  %v194 = vpop.f32.mrb[0].mxu0
  %v195 = vadd.f32 0.0, %v194
  %v196 = vpop.f32.mrb[0].mxu0
  %197 = vmatprep.mubr.f32.mxu0 0.0
  %198 = vmatmul.mubr.f32.gmra.mrb[0].mxu0 %v106
  %v199 = vpop.f32.mrb[0].mxu0
  %v200 = vadd.f32 0.0, %v199
  %v201 = vpop.f32.mrb[0].mxu0
  %202 = vmatprep.mubr.f32.mxu0 0.0
  %203 = vmatmul.mubr.f32.gmra.mrb[0].mxu0 %v109
  %v204 = vpop.f32.mrb[0].mxu0
  %v205 = vadd.f32 0.0, %v204
  %v206 = vpop.f32.mrb[0].mxu0
  %207 = vmatprep.mubr.f32.mxu0 0.0
  %208 = vmatmul.mubr.f32.gmra.mrb[0].mxu0 %v112
  %v209 = vpop.f32.mrb[0].mxu0
  %v210 = vadd.f32 0.0, %v209
  %v211 = vpop.f32.mrb[0].mxu0
  %212 = vmatprep.mubr.f32.mxu0 0.0
  %213 = vmatmul.mubr.f32.gmra.mrb[0].mxu0 %v115
  %v214 = vpop.f32.mrb[0].mxu0
  %v215 = vadd.f32 0.0, %v214
  %v216 = vpop.f32.mrb[0].mxu0
  %217 = vmatprep.mubr.f32.mxu0 0.0
  %218 = vmatmul.mubr.f32.gmra.mrb[0].mxu0 %v118
  %v219 = vpop.f32.mrb[0].mxu0
  %v220 = vadd.f32 0.0, %v219
  %v221 = vpop.f32.mrb[0].mxu0
  %222 = vmatprep.mubr.f32.mxu0 0.0
  %223 = vmatmul.mubr.f32.gmra.mrb[0].mxu0 %v121
  %v224 = vpop.f32.mrb[0].mxu0
  %v225 = vadd.f32 0.0, %v224
  %v226 = vpop.f32.mrb[0].mxu0
  %227 = vdwg.mxu0
  %v228 = vmul.f32 %v75, %v190
  %v229 = vmul.f32 %v76, %v195
  %v230 = vmul.f32 %v77, %v200
  %v231 = vmul.f32 %v78, %v205
  %v232 = vmul.f32 %v79, %v210
  %v233 = vmul.f32 %v80, %v215
  %v234 = vmul.f32 %v81, %v220
  %v235 = vmul.f32 %v82, %v225
  %v236 = vld [vmem:[%s2] sm:$0xff]
  %v237 = vlaneseq
  %v238 = vshrl.u32 %v237, 7
  %v239 = vsub.s32 0, %v238
  %v240 = vrot.slane %v83, %v239
  %vm241 = vcmask 64512
  %v243 = vsel %vm241, %v228, 0
  %v246 = vsel %vm241, %v229, 0
  %v249 = vsel %vm241, %v230, 0
  %v252 = vsel %vm241, %v231, 0
  %v255 = vsel %vm241, %v232, 0
  %v258 = vsel %vm241, %v233, 0
  %v261 = vsel %vm241, %v234, 0
  %v264 = vsel %vm241, %v235, 0
  %266 = vmatprep.subr.mxu0 0.0
  %267 = vmatpush1.msra.mxu0 %v236
  %268 = vmatprep.subr.mxu0 0.0
  %269 = vmatpush1.msra.mxu0 0.0
  %270 = vmatprep.subr.mxu0 0.0
  %271 = vmatpush1.msra.mxu0 0.0
  %272 = vmatprep.subr.mxu0 0.0
  %273 = vmatpush1.msra.mxu0 0.0
  %274 = vmatprep.subr.mxu0 0.0
  %275 = vmatpush1.msra.mxu0 0.0
  %276 = vmatprep.subr.mxu0 0.0
  %277 = vmatpush1.msra.mxu0 0.0
  %278 = vmatprep.subr.mxu0 0.0
  %279 = vmatpush1.msra.mxu0 0.0
  %280 = vmatprep.subr.mxu0 0.0
  %281 = vmatpush1.msra.mxu0 0.0
  %282 = vmatprep.subr.mxu0 0.0
  %283 = vmatpush1.msra.mxu0 0.0
  %284 = vmatprep.subr.mxu0 0.0
  %285 = vmatpush1.msra.mxu0 0.0
  %286 = vmatprep.subr.mxu0 0.0
  %287 = vmatpush1.msra.mxu0 0.0
  %288 = vmatprep.subr.mxu0 0.0
  %289 = vmatpush1.msra.mxu0 0.0
  %290 = vmatprep.subr.mxu0 0.0
  %291 = vmatpush1.msra.mxu0 0.0
  %292 = vmatprep.subr.mxu0 0.0
  %293 = vmatpush1.msra.mxu0 0.0
  %294 = vmatprep.subr.mxu0 0.0
  %295 = vmatpush1.msra.mxu0 0.0
  %296 = vmatprep.subr.mxu0 0.0
  %297 = vmatpush1.msra.mxu0 0.0
  %298 = vmatprep.subr.mxu0 0.0
  %299 = vmatpush1.msra.mxu0 0.0
  %300 = vmatprep.subr.mxu0 0.0
  %301 = vmatpush1.msra.mxu0 0.0
  %302 = vmatprep.subr.mxu0 0.0
  %303 = vmatpush1.msra.mxu0 0.0
  %304 = vmatprep.subr.mxu0 0.0
  %305 = vmatpush1.msra.mxu0 0.0
  %306 = vmatprep.subr.mxu0 0.0
  %307 = vmatpush1.msra.mxu0 0.0
  %308 = vmatprep.subr.mxu0 0.0
  %309 = vmatpush1.msra.mxu0 0.0
  %310 = vmatprep.subr.mxu0 0.0
  %311 = vmatpush1.msra.mxu0 0.0
  %312 = vmatprep.subr.mxu0 0.0
  %313 = vmatpush1.msra.mxu0 0.0
  %314 = vmatprep.subr.mxu0 0.0
  %315 = vmatpush1.msra.mxu0 0.0
  %316 = vmatprep.subr.mxu0 0.0
  %317 = vmatpush1.msra.mxu0 0.0
  %318 = vmatprep.subr.mxu0 0.0
  %319 = vmatpush1.msra.mxu0 0.0
  %320 = vmatprep.subr.mxu0 0.0
  %321 = vmatpush1.msra.mxu0 0.0
  %322 = vmatprep.subr.mxu0 0.0
  %323 = vmatpush1.msra.mxu0 0.0
  %324 = vmatprep.subr.mxu0 0.0
  %325 = vmatpush1.msra.mxu0 0.0
  %326 = vmatprep.subr.mxu0 0.0
  %327 = vmatpush1.msra.mxu0 0.0
  %328 = vmatprep.subr.mxu0 0.0
  %329 = vmatpush1.msra.mxu0 0.0
  %330 = vmatprep.mubr.f32.mxu0 0.0
  %331 = vmatmul.mubr.f32.gmra.mrb[0].mxu0 %v243
  %v332 = vpop.f32.mrb[0].mxu0
  %v333 = vadd.f32 %v240, %v332
  %v334 = vpop.f32.mrb[0].mxu0
  %335 = vmatprep.mubr.f32.mxu0 0.0
  %336 = vmatmul.mubr.f32.gmra.mrb[0].mxu0 %v246
  %v337 = vpop.f32.mrb[0].mxu0
  %v338 = vadd.f32 %v240, %v337
  %v339 = vpop.f32.mrb[0].mxu0
  %340 = vmatprep.mubr.f32.mxu0 0.0
  %341 = vmatmul.mubr.f32.gmra.mrb[0].mxu0 %v249
  %v342 = vpop.f32.mrb[0].mxu0
  %v343 = vadd.f32 %v240, %v342
  %v344 = vpop.f32.mrb[0].mxu0
  %345 = vmatprep.mubr.f32.mxu0 0.0
  %346 = vmatmul.mubr.f32.gmra.mrb[0].mxu0 %v252
  %v347 = vpop.f32.mrb[0].mxu0
  %v348 = vadd.f32 %v240, %v347
  %v349 = vpop.f32.mrb[0].mxu0
  %350 = vmatprep.mubr.f32.mxu0 0.0
  %351 = vmatmul.mubr.f32.gmra.mrb[0].mxu0 %v255
  %v352 = vpop.f32.mrb[0].mxu0
  %v353 = vadd.f32 %v240, %v352
  %v354 = vpop.f32.mrb[0].mxu0
  %355 = vmatprep.mubr.f32.mxu0 0.0
  %356 = vmatmul.mubr.f32.gmra.mrb[0].mxu0 %v258
  %v357 = vpop.f32.mrb[0].mxu0
  %v358 = vadd.f32 %v240, %v357
  %v359 = vpop.f32.mrb[0].mxu0
  %360 = vmatprep.mubr.f32.mxu0 0.0
  %361 = vmatmul.mubr.f32.gmra.mrb[0].mxu0 %v261
  %v362 = vpop.f32.mrb[0].mxu0
  %v363 = vadd.f32 %v240, %v362
  %v364 = vpop.f32.mrb[0].mxu0
  %365 = vmatprep.mubr.f32.mxu0 0.0
  %366 = vmatmul.mubr.f32.gmra.mrb[0].mxu0 %v264
  %v367 = vpop.f32.mrb[0].mxu0
  %v368 = vadd.f32 %v240, %v367
  %v369 = vpop.f32.mrb[0].mxu0
  %370 = vdwg.mxu0
  %v371 = vmax.f32 %v333, 0.0
  %v372 = vmax.f32 %v338, 0.0
  %v373 = vmax.f32 %v343, 0.0
  %v374 = vmax.f32 %v348, 0.0
  %v375 = vmax.f32 %v353, 0.0
  %v376 = vmax.f32 %v358, 0.0
  %v377 = vmax.f32 %v363, 0.0
  %v378 = vmax.f32 %v368, 0.0
  %v379 = vlaneseq
  %v380 = vshrl.u32 %v379, 7
  %v381 = vsub.s32 0, %v380
  %v382 = vrot.slane %v84, %v381
  %v383 = vmul.f32 %v371, %v382
  %v384 = vmul.f32 %v372, %v382
  %v385 = vmul.f32 %v373, %v382
  %v386 = vmul.f32 %v374, %v382
  %v387 = vmul.f32 %v375, %v382
  %v388 = vmul.f32 %v376, %v382
  %v389 = vmul.f32 %v377, %v382
  %v390 = vmul.f32 %v378, %v382
  %v391 = vlaneseq
  %v392 = vshrl.u32 %v391, 7
  %v393 = vsub.s32 0, %v392
  %v394 = vrot.slane %v85, %v393
  %v395 = vadd.f32 %v383, %v394
  %v396 = vadd.f32 %v384, %v394
  %v397 = vadd.f32 %v385, %v394
  %v398 = vadd.f32 %v386, %v394
  %v399 = vadd.f32 %v387, %v394
  %v400 = vadd.f32 %v388, %v394
  %v401 = vadd.f32 %v389, %v394
  %v402 = vadd.f32 %v390, %v394
  %v403 = vld [vmem:[%s3] sm:$0xff]
  %v404 = vld [vmem:[%s3 + $0x8] sm:$0xff]
  %v405 = vld [vmem:[%s3 + $0x10] sm:$0xff]
  %v406 = vld [vmem:[%s3 + $0x18] sm:$0xff]
  %vm407 = vcmask 261120
  %v409 = vsel %vm407, %v395, 0
  %v412 = vsel %vm407, %v396, 0
  %v415 = vsel %vm407, %v397, 0
  %v418 = vsel %vm407, %v398, 0
  %v421 = vsel %vm407, %v399, 0
  %v424 = vsel %vm407, %v400, 0
  %v427 = vsel %vm407, %v401, 0
  %v430 = vsel %vm407, %v402, 0
  %432 = vmatprep.subr.mxu0 0.0
  %433 = vmatpush1.msra.mxu0 %v403
  %434 = vmatprep.subr.mxu0 0.0
  %435 = vmatpush1.msra.mxu0 %v404
  %436 = vmatprep.subr.mxu0 0.0
  %437 = vmatpush1.msra.mxu0 %v405
  %438 = vmatprep.subr.mxu0 0.0
  %439 = vmatpush1.msra.mxu0 %v406
  %440 = vmatprep.subr.mxu0 0.0
  %441 = vmatpush1.msra.mxu0 0.0
  %442 = vmatprep.subr.mxu0 0.0
  %443 = vmatpush1.msra.mxu0 0.0
  %444 = vmatprep.subr.mxu0 0.0
  %445 = vmatpush1.msra.mxu0 0.0
  %446 = vmatprep.subr.mxu0 0.0
  %447 = vmatpush1.msra.mxu0 0.0
  %448 = vmatprep.subr.mxu0 0.0
  %449 = vmatpush1.msra.mxu0 0.0
  %450 = vmatprep.subr.mxu0 0.0
  %451 = vmatpush1.msra.mxu0 0.0
  %452 = vmatprep.subr.mxu0 0.0
  %453 = vmatpush1.msra.mxu0 0.0
  %454 = vmatprep.subr.mxu0 0.0
  %455 = vmatpush1.msra.mxu0 0.0
  %456 = vmatprep.subr.mxu0 0.0
  %457 = vmatpush1.msra.mxu0 0.0
  %458 = vmatprep.subr.mxu0 0.0
  %459 = vmatpush1.msra.mxu0 0.0
  %460 = vmatprep.subr.mxu0 0.0
  %461 = vmatpush1.msra.mxu0 0.0
  %462 = vmatprep.subr.mxu0 0.0
  %463 = vmatpush1.msra.mxu0 0.0
  %464 = vmatprep.subr.mxu0 0.0
  %465 = vmatpush1.msra.mxu0 0.0
  %466 = vmatprep.subr.mxu0 0.0
  %467 = vmatpush1.msra.mxu0 0.0
  %468 = vmatprep.subr.mxu0 0.0
  %469 = vmatpush1.msra.mxu0 0.0
  %470 = vmatprep.subr.mxu0 0.0
  %471 = vmatpush1.msra.mxu0 0.0
  %472 = vmatprep.subr.mxu0 0.0
  %473 = vmatpush1.msra.mxu0 0.0
  %474 = vmatprep.subr.mxu0 0.0
  %475 = vmatpush1.msra.mxu0 0.0
  %476 = vmatprep.subr.mxu0 0.0
  %477 = vmatpush1.msra.mxu0 0.0
  %478 = vmatprep.subr.mxu0 0.0
  %479 = vmatpush1.msra.mxu0 0.0
  %480 = vmatprep.subr.mxu0 0.0
  %481 = vmatpush1.msra.mxu0 0.0
  %482 = vmatprep.subr.mxu0 0.0
  %483 = vmatpush1.msra.mxu0 0.0
  %484 = vmatprep.subr.mxu0 0.0
  %485 = vmatpush1.msra.mxu0 0.0
  %486 = vmatprep.subr.mxu0 0.0
  %487 = vmatpush1.msra.mxu0 0.0
  %488 = vmatprep.subr.mxu0 0.0
  %489 = vmatpush1.msra.mxu0 0.0
  %490 = vmatprep.subr.mxu0 0.0
  %491 = vmatpush1.msra.mxu0 0.0
  %492 = vmatprep.subr.mxu0 0.0
  %493 = vmatpush1.msra.mxu0 0.0
  %494 = vmatprep.subr.mxu0 0.0
  %495 = vmatpush1.msra.mxu0 0.0
  %496 = vmatprep.mubr.f32.mxu0 0.0
  %497 = vmatmul.mubr.f32.gmra.mrb[0].mxu0 %v409
  %v498 = vpop.f32.mrb[0].mxu0
  %v499 = vadd.f32 0.0, %v498
  %v500 = vpop.f32.mrb[0].mxu0
  %501 = vmatprep.mubr.f32.mxu0 0.0
  %502 = vmatmul.mubr.f32.gmra.mrb[0].mxu0 %v412
  %v503 = vpop.f32.mrb[0].mxu0
  %v504 = vadd.f32 0.0, %v503
  %v505 = vpop.f32.mrb[0].mxu0
  %506 = vmatprep.mubr.f32.mxu0 0.0
  %507 = vmatmul.mubr.f32.gmra.mrb[0].mxu0 %v415
  %v508 = vpop.f32.mrb[0].mxu0
  %v509 = vadd.f32 0.0, %v508
  %v510 = vpop.f32.mrb[0].mxu0
  %511 = vmatprep.mubr.f32.mxu0 0.0
  %512 = vmatmul.mubr.f32.gmra.mrb[0].mxu0 %v418
  %v513 = vpop.f32.mrb[0].mxu0
  %v514 = vadd.f32 0.0, %v513
  %v515 = vpop.f32.mrb[0].mxu0
  %516 = vmatprep.mubr.f32.mxu0 0.0
  %517 = vmatmul.mubr.f32.gmra.mrb[0].mxu0 %v421
  %v518 = vpop.f32.mrb[0].mxu0
  %v519 = vadd.f32 0.0, %v518
  %v520 = vpop.f32.mrb[0].mxu0
  %521 = vmatprep.mubr.f32.mxu0 0.0
  %522 = vmatmul.mubr.f32.gmra.mrb[0].mxu0 %v424
  %v523 = vpop.f32.mrb[0].mxu0
  %v524 = vadd.f32 0.0, %v523
  %v525 = vpop.f32.mrb[0].mxu0
  %526 = vmatprep.mubr.f32.mxu0 0.0
  %527 = vmatmul.mubr.f32.gmra.mrb[0].mxu0 %v427
  %v528 = vpop.f32.mrb[0].mxu0
  %v529 = vadd.f32 0.0, %v528
  %v530 = vpop.f32.mrb[0].mxu0
  %531 = vmatprep.mubr.f32.mxu0 0.0
  %532 = vmatmul.mubr.f32.gmra.mrb[0].mxu0 %v430
  %v533 = vpop.f32.mrb[0].mxu0
  %v534 = vadd.f32 0.0, %v533
  %v535 = vpop.f32.mrb[0].mxu0
  %536 = vdwg.mxu0
  %v537 = vmul.f32 %v75, %v499
  %v538 = vmul.f32 %v76, %v504
  %v539 = vmul.f32 %v77, %v509
  %v540 = vmul.f32 %v78, %v514
  %v541 = vmul.f32 %v79, %v519
  %v542 = vmul.f32 %v80, %v524
  %v543 = vmul.f32 %v81, %v529
  %v544 = vmul.f32 %v82, %v534
  %545 = vmatprep.subr.mxu0 0.0
  %546 = vmatpush1.msra.mxu0 %v537
  %547 = vmatprep.subr.mxu0 0.0
  %548 = vmatpush1.msra.mxu0 %v538
  %549 = vmatprep.subr.mxu0 0.0
  %550 = vmatpush1.msra.mxu0 %v539
  %551 = vmatprep.subr.mxu0 0.0
  %552 = vmatpush1.msra.mxu0 %v540
  %553 = vmatprep.subr.mxu0 0.0
  %554 = vmatpush1.msra.mxu0 %v541
  %555 = vmatprep.subr.mxu0 0.0
  %556 = vmatpush1.msra.mxu0 %v542
  %557 = vmatprep.subr.mxu0 0.0
  %558 = vmatpush1.msra.mxu0 %v543
  %559 = vmatprep.subr.mxu0 0.0
  %560 = vmatpush1.msra.mxu0 %v544
  %561 = vmatprep.subr.mxu0 0.0
  %562 = vmatpush1.msra.mxu0 0.0
  %563 = vmatprep.subr.mxu0 0.0
  %564 = vmatpush1.msra.mxu0 0.0
  %565 = vmatprep.subr.mxu0 0.0
  %566 = vmatpush1.msra.mxu0 0.0
  %567 = vmatprep.subr.mxu0 0.0
  %568 = vmatpush1.msra.mxu0 0.0
  %569 = vmatprep.subr.mxu0 0.0
  %570 = vmatpush1.msra.mxu0 0.0
  %571 = vmatprep.subr.mxu0 0.0
  %572 = vmatpush1.msra.mxu0 0.0
  %573 = vmatprep.subr.mxu0 0.0
  %574 = vmatpush1.msra.mxu0 0.0
  %575 = vmatprep.subr.mxu0 0.0
  %576 = vmatpush1.msra.mxu0 0.0
  %577 = vmatprep.subr.mxu0 0.0
  %578 = vmatpush1.msra.mxu0 0.0
  %579 = vmatprep.subr.mxu0 0.0
  %580 = vmatpush1.msra.mxu0 0.0
  %581 = vmatprep.subr.mxu0 0.0
  %582 = vmatpush1.msra.mxu0 0.0
  %583 = vmatprep.subr.mxu0 0.0
  %584 = vmatpush1.msra.mxu0 0.0
  %585 = vmatprep.subr.mxu0 0.0
  %586 = vmatpush1.msra.mxu0 0.0
  %587 = vmatprep.subr.mxu0 0.0
  %588 = vmatpush1.msra.mxu0 0.0
  %589 = vmatprep.subr.mxu0 0.0
  %590 = vmatpush1.msra.mxu0 0.0
  %591 = vmatprep.subr.mxu0 0.0
  %592 = vmatpush1.msra.mxu0 0.0
  %593 = vmatprep.subr.mxu0 0.0
  %594 = vmatpush1.msra.mxu0 0.0
  %595 = vmatprep.subr.mxu0 0.0
  %596 = vmatpush1.msra.mxu0 0.0
  %597 = vmatprep.subr.mxu0 0.0
  %598 = vmatpush1.msra.mxu0 0.0
  %599 = vmatprep.subr.mxu0 0.0
  %600 = vmatpush1.msra.mxu0 0.0
  %601 = vmatprep.subr.mxu0 0.0
  %602 = vmatpush1.msra.mxu0 0.0
  %603 = vmatprep.subr.mxu0 0.0
  %604 = vmatpush1.msra.mxu0 0.0
  %605 = vmatprep.subr.mxu0 0.0
  %606 = vmatpush1.msra.mxu0 0.0
  %607 = vmatprep.subr.mxu0 0.0
  %608 = vmatpush1.msra.mxu0 0.0
  %609 = vmatprep.mubr.f32.mxu0 0.0
  %610 = vmatmul.mubr.f32.gmra.mrb[0].mxu0 %v100
  %v611 = vpop.f32.mrb[0].mxu0
  %v612 = vadd.f32 0.0, %v611
  %v613 = vpop.f32.mrb[0].mxu0
  %614 = vmatprep.mubr.f32.mxu0 0.0
  %615 = vmatmul.mubr.f32.gmra.mrb[0].mxu0 %v103
  %v616 = vpop.f32.mrb[0].mxu0
  %v617 = vadd.f32 0.0, %v616
  %v618 = vpop.f32.mrb[0].mxu0
  %619 = vmatprep.mubr.f32.mxu0 0.0
  %620 = vmatmul.mubr.f32.gmra.mrb[0].mxu0 %v106
  %v621 = vpop.f32.mrb[0].mxu0
  %v622 = vadd.f32 0.0, %v621
  %v623 = vpop.f32.mrb[0].mxu0
  %624 = vmatprep.mubr.f32.mxu0 0.0
  %625 = vmatmul.mubr.f32.gmra.mrb[0].mxu0 %v109
  %v626 = vpop.f32.mrb[0].mxu0
  %v627 = vadd.f32 0.0, %v626
  %v628 = vpop.f32.mrb[0].mxu0
  %629 = vmatprep.mubr.f32.mxu0 0.0
  %630 = vmatmul.mubr.f32.gmra.mrb[0].mxu0 %v112
  %v631 = vpop.f32.mrb[0].mxu0
  %v632 = vadd.f32 0.0, %v631
  %v633 = vpop.f32.mrb[0].mxu0
  %634 = vmatprep.mubr.f32.mxu0 0.0
  %635 = vmatmul.mubr.f32.gmra.mrb[0].mxu0 %v115
  %v636 = vpop.f32.mrb[0].mxu0
  %v637 = vadd.f32 0.0, %v636
  %v638 = vpop.f32.mrb[0].mxu0
  %639 = vmatprep.mubr.f32.mxu0 0.0
  %640 = vmatmul.mubr.f32.gmra.mrb[0].mxu0 %v118
  %v641 = vpop.f32.mrb[0].mxu0
  %v642 = vadd.f32 0.0, %v641
  %v643 = vpop.f32.mrb[0].mxu0
  %644 = vmatprep.mubr.f32.mxu0 0.0
  %645 = vmatmul.mubr.f32.gmra.mrb[0].mxu0 %v121
  %v646 = vpop.f32.mrb[0].mxu0
  %v647 = vadd.f32 0.0, %v646
  %v648 = vpop.f32.mrb[0].mxu0
  %649 = vdwg.mxu0
  %v650 = vmul.f32 %v75, %v612
  %v651 = vmul.f32 %v76, %v617
  %v652 = vmul.f32 %v77, %v622
  %v653 = vmul.f32 %v78, %v627
  %v654 = vmul.f32 %v79, %v632
  %v655 = vmul.f32 %v80, %v637
  %v656 = vmul.f32 %v81, %v642
  %v657 = vmul.f32 %v82, %v647
  %v658 = vlaneseq
  %v659 = vshrl.u32 %v658, 7
  %v660 = vsub.s32 0, %v659
  %v661 = vrot.slane %v86, %v660
  %v662 = vadd.f32 %v650, %v661
  %v663 = vadd.f32 %v651, %v661
  %v664 = vadd.f32 %v652, %v661
  %v665 = vadd.f32 %v653, %v661
  %v666 = vadd.f32 %v654, %v661
  %v667 = vadd.f32 %v655, %v661
  %v668 = vadd.f32 %v656, %v661
  %v669 = vadd.f32 %v657, %v661
  %v670 = vmax.f32 %v662, 0.0
  %v671 = vmax.f32 %v663, 0.0
  %v672 = vmax.f32 %v664, 0.0
  %v673 = vmax.f32 %v665, 0.0
  %v674 = vmax.f32 %v666, 0.0
  %v675 = vmax.f32 %v667, 0.0
  %v676 = vmax.f32 %v668, 0.0
  %v677 = vmax.f32 %v669, 0.0
  %v678 = vlaneseq
  %v679 = vshrl.u32 %v678, 7
  %v680 = vsub.s32 0, %v679
  %v681 = vrot.slane %v87, %v680
  %v682 = vmul.f32 %v670, %v681
  %v683 = vmul.f32 %v671, %v681
  %v684 = vmul.f32 %v672, %v681
  %v685 = vmul.f32 %v673, %v681
  %v686 = vmul.f32 %v674, %v681
  %v687 = vmul.f32 %v675, %v681
  %v688 = vmul.f32 %v676, %v681
  %v689 = vmul.f32 %v677, %v681
  %v690 = vlaneseq
  %v691 = vshrl.u32 %v690, 7
  %v692 = vsub.s32 0, %v691
  %v693 = vrot.slane %v88, %v692
  %v694 = vadd.f32 %v682, %v693
  %v695 = vadd.f32 %v683, %v693
  %v696 = vadd.f32 %v684, %v693
  %v697 = vadd.f32 %v685, %v693
  %v698 = vadd.f32 %v686, %v693
  %v699 = vadd.f32 %v687, %v693
  %v700 = vadd.f32 %v688, %v693
  %v701 = vadd.f32 %v689, %v693
  %v702 = vld [vmem:[%s4] sm:$0xff]
  %v703 = vld [vmem:[%s4 + $0x8] sm:$0xff]
  %v704 = vld [vmem:[%s4 + $0x10] sm:$0xff]
  %v705 = vld [vmem:[%s4 + $0x18] sm:$0xff]
  %v706 = vld [vmem:[%s4 + $0x20] sm:$0xff]
  %707 = vmatprep.subr.mxu0 0.0
  %708 = vmatpush1.msra.mxu0 %v703
  %709 = vmatprep.subr.mxu0 0.0
  %710 = vmatpush1.msra.mxu0 %v704
  %711 = vmatprep.subr.mxu0 0.0
  %712 = vmatpush1.msra.mxu0 %v705
  %713 = vmatprep.subr.mxu0 0.0
  %714 = vmatpush1.msra.mxu0 %v706
  %715 = vmatprep.subr.mxu0 0.0
  %716 = vmatpush1.msra.mxu0 0.0
  %717 = vmatprep.subr.mxu0 0.0
  %718 = vmatpush1.msra.mxu0 0.0
  %719 = vmatprep.subr.mxu0 0.0
  %720 = vmatpush1.msra.mxu0 0.0
  %721 = vmatprep.subr.mxu0 0.0
  %722 = vmatpush1.msra.mxu0 0.0
  %723 = vmatprep.subr.mxu0 0.0
  %724 = vmatpush1.msra.mxu0 0.0
  %725 = vmatprep.subr.mxu0 0.0
  %726 = vmatpush1.msra.mxu0 0.0
  %727 = vmatprep.subr.mxu0 0.0
  %728 = vmatpush1.msra.mxu0 0.0
  %729 = vmatprep.subr.mxu0 0.0
  %730 = vmatpush1.msra.mxu0 0.0
  %731 = vmatprep.subr.mxu0 0.0
  %732 = vmatpush1.msra.mxu0 0.0
  %733 = vmatprep.subr.mxu0 0.0
  %734 = vmatpush1.msra.mxu0 0.0
  %735 = vmatprep.subr.mxu0 0.0
  %736 = vmatpush1.msra.mxu0 0.0
  %737 = vmatprep.subr.mxu0 0.0
  %738 = vmatpush1.msra.mxu0 0.0
  %739 = vmatprep.subr.mxu0 0.0
  %740 = vmatpush1.msra.mxu0 0.0
  %741 = vmatprep.subr.mxu0 0.0
  %742 = vmatpush1.msra.mxu0 0.0
  %743 = vmatprep.subr.mxu0 0.0
  %744 = vmatpush1.msra.mxu0 0.0
  %745 = vmatprep.subr.mxu0 0.0
  %746 = vmatpush1.msra.mxu0 0.0
  %747 = vmatprep.subr.mxu0 0.0
  %748 = vmatpush1.msra.mxu0 0.0
  %749 = vmatprep.subr.mxu0 0.0
  %750 = vmatpush1.msra.mxu0 0.0
  %751 = vmatprep.subr.mxu0 0.0
  %752 = vmatpush1.msra.mxu0 0.0
  %753 = vmatprep.subr.mxu0 0.0
  %754 = vmatpush1.msra.mxu0 0.0
  %755 = vmatprep.subr.mxu0 0.0
  %756 = vmatpush1.msra.mxu0 0.0
  %757 = vmatprep.subr.mxu0 0.0
  %758 = vmatpush1.msra.mxu0 0.0
  %759 = vmatprep.subr.mxu0 0.0
  %760 = vmatpush1.msra.mxu0 0.0
  %761 = vmatprep.subr.mxu0 0.0
  %762 = vmatpush1.msra.mxu0 0.0
  %763 = vmatprep.subr.mxu0 0.0
  %764 = vmatpush1.msra.mxu0 0.0
  %765 = vmatprep.subr.mxu0 0.0
  %766 = vmatpush1.msra.mxu0 0.0
  %767 = vmatprep.subr.mxu0 0.0
  %768 = vmatpush1.msra.mxu0 0.0
  %769 = vmatprep.subr.mxu0 0.0
  %770 = vmatpush1.msra.mxu0 0.0
  %771 = vmatprep.mubr.f32.mxu0 0.0
  %772 = vmatmul.mubr.f32.gmra.mrb[0].mxu0 %v409
  %v773 = vpop.f32.mrb[0].mxu0
  %v774 = vadd.f32 0.0, %v773
  %v775 = vpop.f32.mrb[0].mxu0
  %776 = vmatprep.mubr.f32.mxu0 0.0
  %777 = vmatmul.mubr.f32.gmra.mrb[0].mxu0 %v412
  %v778 = vpop.f32.mrb[0].mxu0
  %v779 = vadd.f32 0.0, %v778
  %v780 = vpop.f32.mrb[0].mxu0
  %781 = vmatprep.mubr.f32.mxu0 0.0
  %782 = vmatmul.mubr.f32.gmra.mrb[0].mxu0 %v415
  %v783 = vpop.f32.mrb[0].mxu0
  %v784 = vadd.f32 0.0, %v783
  %v785 = vpop.f32.mrb[0].mxu0
  %786 = vmatprep.mubr.f32.mxu0 0.0
  %787 = vmatmul.mubr.f32.gmra.mrb[0].mxu0 %v418
  %v788 = vpop.f32.mrb[0].mxu0
  %v789 = vadd.f32 0.0, %v788
  %v790 = vpop.f32.mrb[0].mxu0
  %791 = vmatprep.mubr.f32.mxu0 0.0
  %792 = vmatmul.mubr.f32.gmra.mrb[0].mxu0 %v421
  %v793 = vpop.f32.mrb[0].mxu0
  %v794 = vadd.f32 0.0, %v793
  %v795 = vpop.f32.mrb[0].mxu0
  %796 = vmatprep.mubr.f32.mxu0 0.0
  %797 = vmatmul.mubr.f32.gmra.mrb[0].mxu0 %v424
  %v798 = vpop.f32.mrb[0].mxu0
  %v799 = vadd.f32 0.0, %v798
  %v800 = vpop.f32.mrb[0].mxu0
  %801 = vmatprep.mubr.f32.mxu0 0.0
  %802 = vmatmul.mubr.f32.gmra.mrb[0].mxu0 %v427
  %v803 = vpop.f32.mrb[0].mxu0
  %v804 = vadd.f32 0.0, %v803
  %v805 = vpop.f32.mrb[0].mxu0
  %806 = vmatprep.mubr.f32.mxu0 0.0
  %807 = vmatmul.mubr.f32.gmra.mrb[0].mxu0 %v430
  %v808 = vpop.f32.mrb[0].mxu0
  %v809 = vadd.f32 0.0, %v808
  %v810 = vpop.f32.mrb[0].mxu0
  %811 = vdwg.mxu0
  %v813 = vsel %vm241, %v34, 0
  %v816 = vsel %vm241, %v35, 0
  %v819 = vsel %vm241, %v36, 0
  %v822 = vsel %vm241, %v37, 0
  %v825 = vsel %vm241, %v38, 0
  %v828 = vsel %vm241, %v39, 0
  %v831 = vsel %vm241, %v40, 0
  %v834 = vsel %vm241, %v41, 0
  %836 = vmatprep.subr.mxu0 0.0
  %837 = vmatpush1.msra.mxu0 %v702
  %838 = vmatprep.subr.mxu0 0.0
  %839 = vmatpush1.msra.mxu0 0.0
  %840 = vmatprep.subr.mxu0 0.0
  %841 = vmatpush1.msra.mxu0 0.0
  %842 = vmatprep.subr.mxu0 0.0
  %843 = vmatpush1.msra.mxu0 0.0
  %844 = vmatprep.subr.mxu0 0.0
  %845 = vmatpush1.msra.mxu0 0.0
  %846 = vmatprep.subr.mxu0 0.0
  %847 = vmatpush1.msra.mxu0 0.0
  %848 = vmatprep.subr.mxu0 0.0
  %849 = vmatpush1.msra.mxu0 0.0
  %850 = vmatprep.subr.mxu0 0.0
  %851 = vmatpush1.msra.mxu0 0.0
  %852 = vmatprep.subr.mxu0 0.0
  %853 = vmatpush1.msra.mxu0 0.0
  %854 = vmatprep.subr.mxu0 0.0
  %855 = vmatpush1.msra.mxu0 0.0
  %856 = vmatprep.subr.mxu0 0.0
  %857 = vmatpush1.msra.mxu0 0.0
  %858 = vmatprep.subr.mxu0 0.0
  %859 = vmatpush1.msra.mxu0 0.0
  %860 = vmatprep.subr.mxu0 0.0
  %861 = vmatpush1.msra.mxu0 0.0
  %862 = vmatprep.subr.mxu0 0.0
  %863 = vmatpush1.msra.mxu0 0.0
  %864 = vmatprep.subr.mxu0 0.0
  %865 = vmatpush1.msra.mxu0 0.0
  %866 = vmatprep.subr.mxu0 0.0
  %867 = vmatpush1.msra.mxu0 0.0
  %868 = vmatprep.subr.mxu0 0.0
  %869 = vmatpush1.msra.mxu0 0.0
  %870 = vmatprep.subr.mxu0 0.0
  %871 = vmatpush1.msra.mxu0 0.0
  %872 = vmatprep.subr.mxu0 0.0
  %873 = vmatpush1.msra.mxu0 0.0
  %874 = vmatprep.subr.mxu0 0.0
  %875 = vmatpush1.msra.mxu0 0.0
  %876 = vmatprep.subr.mxu0 0.0
  %877 = vmatpush1.msra.mxu0 0.0
  %878 = vmatprep.subr.mxu0 0.0
  %879 = vmatpush1.msra.mxu0 0.0
  %880 = vmatprep.subr.mxu0 0.0
  %881 = vmatpush1.msra.mxu0 0.0
  %882 = vmatprep.subr.mxu0 0.0
  %883 = vmatpush1.msra.mxu0 0.0
  %884 = vmatprep.subr.mxu0 0.0
  %885 = vmatpush1.msra.mxu0 0.0
  %886 = vmatprep.subr.mxu0 0.0
  %887 = vmatpush1.msra.mxu0 0.0
  %888 = vmatprep.subr.mxu0 0.0
  %889 = vmatpush1.msra.mxu0 0.0
  %890 = vmatprep.subr.mxu0 0.0
  %891 = vmatpush1.msra.mxu0 0.0
  %892 = vmatprep.subr.mxu0 0.0
  %893 = vmatpush1.msra.mxu0 0.0
  %894 = vmatprep.subr.mxu0 0.0
  %895 = vmatpush1.msra.mxu0 0.0
  %896 = vmatprep.subr.mxu0 0.0
  %897 = vmatpush1.msra.mxu0 0.0
  %898 = vmatprep.subr.mxu0 0.0
  %899 = vmatpush1.msra.mxu0 0.0
  %900 = vmatprep.mubr.f32.mxu0 0.0
  %901 = vmatmul.mubr.f32.gmra.mrb[0].mxu0 %v813
  %v902 = vpop.f32.mrb[0].mxu0
  %v903 = vadd.f32 %v774, %v902
  %v904 = vpop.f32.mrb[0].mxu0
  %905 = vmatprep.mubr.f32.mxu0 0.0
  %906 = vmatmul.mubr.f32.gmra.mrb[0].mxu0 %v816
  %v907 = vpop.f32.mrb[0].mxu0
  %v908 = vadd.f32 %v779, %v907
  %v909 = vpop.f32.mrb[0].mxu0
  %910 = vmatprep.mubr.f32.mxu0 0.0
  %911 = vmatmul.mubr.f32.gmra.mrb[0].mxu0 %v819
  %v912 = vpop.f32.mrb[0].mxu0
  %v913 = vadd.f32 %v784, %v912
  %v914 = vpop.f32.mrb[0].mxu0
  %915 = vmatprep.mubr.f32.mxu0 0.0
  %916 = vmatmul.mubr.f32.gmra.mrb[0].mxu0 %v822
  %v917 = vpop.f32.mrb[0].mxu0
  %v918 = vadd.f32 %v789, %v917
  %v919 = vpop.f32.mrb[0].mxu0
  %920 = vmatprep.mubr.f32.mxu0 0.0
  %921 = vmatmul.mubr.f32.gmra.mrb[0].mxu0 %v825
  %v922 = vpop.f32.mrb[0].mxu0
  %v923 = vadd.f32 %v794, %v922
  %v924 = vpop.f32.mrb[0].mxu0
  %925 = vmatprep.mubr.f32.mxu0 0.0
  %926 = vmatmul.mubr.f32.gmra.mrb[0].mxu0 %v828
  %v927 = vpop.f32.mrb[0].mxu0
  %v928 = vadd.f32 %v799, %v927
  %v929 = vpop.f32.mrb[0].mxu0
  %930 = vmatprep.mubr.f32.mxu0 0.0
  %931 = vmatmul.mubr.f32.gmra.mrb[0].mxu0 %v831
  %v932 = vpop.f32.mrb[0].mxu0
  %v933 = vadd.f32 %v804, %v932
  %v934 = vpop.f32.mrb[0].mxu0
  %935 = vmatprep.mubr.f32.mxu0 0.0
  %936 = vmatmul.mubr.f32.gmra.mrb[0].mxu0 %v834
  %v937 = vpop.f32.mrb[0].mxu0
  %v938 = vadd.f32 %v809, %v937
  %v939 = vpop.f32.mrb[0].mxu0
  %940 = vdwg.mxu0
  %v941 = vld [vmem:[%s4 + $0x28] sm:$0xff]
  %v942 = vld [vmem:[%s4 + $0x30] sm:$0xff]
  %v943 = vld [vmem:[%s4 + $0x38] sm:$0xff]
  %v944 = vld [vmem:[%s4 + $0x40] sm:$0xff]
  %v946 = vsel %vm407, %v694, 0
  %v949 = vsel %vm407, %v695, 0
  %v952 = vsel %vm407, %v696, 0
  %v955 = vsel %vm407, %v697, 0
  %v958 = vsel %vm407, %v698, 0
  %v961 = vsel %vm407, %v699, 0
  %v964 = vsel %vm407, %v700, 0
  %v967 = vsel %vm407, %v701, 0
  %969 = vmatprep.subr.mxu0 0.0
  %970 = vmatpush1.msra.mxu0 %v941
  %971 = vmatprep.subr.mxu0 0.0
  %972 = vmatpush1.msra.mxu0 %v942
  %973 = vmatprep.subr.mxu0 0.0
  %974 = vmatpush1.msra.mxu0 %v943
  %975 = vmatprep.subr.mxu0 0.0
  %976 = vmatpush1.msra.mxu0 %v944
  %977 = vmatprep.subr.mxu0 0.0
  %978 = vmatpush1.msra.mxu0 0.0
  %979 = vmatprep.subr.mxu0 0.0
  %980 = vmatpush1.msra.mxu0 0.0
  %981 = vmatprep.subr.mxu0 0.0
  %982 = vmatpush1.msra.mxu0 0.0
  %983 = vmatprep.subr.mxu0 0.0
  %984 = vmatpush1.msra.mxu0 0.0
  %985 = vmatprep.subr.mxu0 0.0
  %986 = vmatpush1.msra.mxu0 0.0
  %987 = vmatprep.subr.mxu0 0.0
  %988 = vmatpush1.msra.mxu0 0.0
  %989 = vmatprep.subr.mxu0 0.0
  %990 = vmatpush1.msra.mxu0 0.0
  %991 = vmatprep.subr.mxu0 0.0
  %992 = vmatpush1.msra.mxu0 0.0
  %993 = vmatprep.subr.mxu0 0.0
  %994 = vmatpush1.msra.mxu0 0.0
  %995 = vmatprep.subr.mxu0 0.0
  %996 = vmatpush1.msra.mxu0 0.0
  %997 = vmatprep.subr.mxu0 0.0
  %998 = vmatpush1.msra.mxu0 0.0
  %999 = vmatprep.subr.mxu0 0.0
  %1000 = vmatpush1.msra.mxu0 0.0
  %1001 = vmatprep.subr.mxu0 0.0
  %1002 = vmatpush1.msra.mxu0 0.0
  %1003 = vmatprep.subr.mxu0 0.0
  %1004 = vmatpush1.msra.mxu0 0.0
  %1005 = vmatprep.subr.mxu0 0.0
  %1006 = vmatpush1.msra.mxu0 0.0
  %1007 = vmatprep.subr.mxu0 0.0
  %1008 = vmatpush1.msra.mxu0 0.0
  %1009 = vmatprep.subr.mxu0 0.0
  %1010 = vmatpush1.msra.mxu0 0.0
  %1011 = vmatprep.subr.mxu0 0.0
  %1012 = vmatpush1.msra.mxu0 0.0
  %1013 = vmatprep.subr.mxu0 0.0
  %1014 = vmatpush1.msra.mxu0 0.0
  %1015 = vmatprep.subr.mxu0 0.0
  %1016 = vmatpush1.msra.mxu0 0.0
  %1017 = vmatprep.subr.mxu0 0.0
  %1018 = vmatpush1.msra.mxu0 0.0
  %1019 = vmatprep.subr.mxu0 0.0
  %1020 = vmatpush1.msra.mxu0 0.0
  %1021 = vmatprep.subr.mxu0 0.0
  %1022 = vmatpush1.msra.mxu0 0.0
  %1023 = vmatprep.subr.mxu0 0.0
  %1024 = vmatpush1.msra.mxu0 0.0
  %1025 = vmatprep.subr.mxu0 0.0
  %1026 = vmatpush1.msra.mxu0 0.0
  %1027 = vmatprep.subr.mxu0 0.0
  %1028 = vmatpush1.msra.mxu0 0.0
  %1029 = vmatprep.subr.mxu0 0.0
  %1030 = vmatpush1.msra.mxu0 0.0
  %1031 = vmatprep.subr.mxu0 0.0
  %1032 = vmatpush1.msra.mxu0 0.0
  %1033 = vmatprep.mubr.f32.mxu0 0.0
  %1034 = vmatmul.mubr.f32.gmra.mrb[0].mxu0 %v946
  %v1035 = vpop.f32.mrb[0].mxu0
  %v1036 = vadd.f32 0.0, %v1035
  %v1037 = vpop.f32.mrb[0].mxu0
  %1038 = vmatprep.mubr.f32.mxu0 0.0
  %1039 = vmatmul.mubr.f32.gmra.mrb[0].mxu0 %v949
  %v1040 = vpop.f32.mrb[0].mxu0
  %v1041 = vadd.f32 0.0, %v1040
  %v1042 = vpop.f32.mrb[0].mxu0
  %1043 = vmatprep.mubr.f32.mxu0 0.0
  %1044 = vmatmul.mubr.f32.gmra.mrb[0].mxu0 %v952
  %v1045 = vpop.f32.mrb[0].mxu0
  %v1046 = vadd.f32 0.0, %v1045
  %v1047 = vpop.f32.mrb[0].mxu0
  %1048 = vmatprep.mubr.f32.mxu0 0.0
  %1049 = vmatmul.mubr.f32.gmra.mrb[0].mxu0 %v955
  %v1050 = vpop.f32.mrb[0].mxu0
  %v1051 = vadd.f32 0.0, %v1050
  %v1052 = vpop.f32.mrb[0].mxu0
  %1053 = vmatprep.mubr.f32.mxu0 0.0
  %1054 = vmatmul.mubr.f32.gmra.mrb[0].mxu0 %v958
  %v1055 = vpop.f32.mrb[0].mxu0
  %v1056 = vadd.f32 0.0, %v1055
  %v1057 = vpop.f32.mrb[0].mxu0
  %1058 = vmatprep.mubr.f32.mxu0 0.0
  %1059 = vmatmul.mubr.f32.gmra.mrb[0].mxu0 %v961
  %v1060 = vpop.f32.mrb[0].mxu0
  %v1061 = vadd.f32 0.0, %v1060
  %v1062 = vpop.f32.mrb[0].mxu0
  %1063 = vmatprep.mubr.f32.mxu0 0.0
  %1064 = vmatmul.mubr.f32.gmra.mrb[0].mxu0 %v964
  %v1065 = vpop.f32.mrb[0].mxu0
  %v1066 = vadd.f32 0.0, %v1065
  %v1067 = vpop.f32.mrb[0].mxu0
  %1068 = vmatprep.mubr.f32.mxu0 0.0
  %1069 = vmatmul.mubr.f32.gmra.mrb[0].mxu0 %v967
  %v1070 = vpop.f32.mrb[0].mxu0
  %v1071 = vadd.f32 0.0, %v1070
  %v1072 = vpop.f32.mrb[0].mxu0
  %1073 = vdwg.mxu0
  %v1074 = vadd.f32 %v903, %v1036
  %v1075 = vadd.f32 %v908, %v1041
  %v1076 = vadd.f32 %v913, %v1046
  %v1077 = vadd.f32 %v918, %v1051
  %v1078 = vadd.f32 %v923, %v1056
  %v1079 = vadd.f32 %v928, %v1061
  %v1080 = vadd.f32 %v933, %v1066
  %v1081 = vadd.f32 %v938, %v1071
  %v1082 = vlaneseq
  %v1083 = vshrl.u32 %v1082, 7
  %v1084 = vsub.s32 0, %v1083
  %v1085 = vrot.slane %v89, %v1084
  %v1086 = vadd.f32 %v1074, %v1085
  %v1087 = vadd.f32 %v1075, %v1085
  %v1088 = vadd.f32 %v1076, %v1085
  %v1089 = vadd.f32 %v1077, %v1085
  %v1090 = vadd.f32 %v1078, %v1085
  %v1091 = vadd.f32 %v1079, %v1085
  %v1092 = vadd.f32 %v1080, %v1085
  %v1093 = vadd.f32 %v1081, %v1085
  %v1094 = vmax.f32 %v1086, 0.0
  %v1095 = vmax.f32 %v1087, 0.0
  %v1096 = vmax.f32 %v1088, 0.0
  %v1097 = vmax.f32 %v1089, 0.0
  %v1098 = vmax.f32 %v1090, 0.0
  %v1099 = vmax.f32 %v1091, 0.0
  %v1100 = vmax.f32 %v1092, 0.0
  %v1101 = vmax.f32 %v1093, 0.0
  %v1102 = vld [vmem:[%s6] sm:$0xff]
  %v1103 = vld [vmem:[%s6 + $0x8] sm:$0xff]
  %v1104 = vld [vmem:[%s6 + $0x10] sm:$0xff]
  %v1105 = vld [vmem:[%s6 + $0x18] sm:$0xff]
  %v1106 = vlaneseq
  %v1107 = vshrl.u32 %v1106, 7
  %v1108 = vsub.s32 0, %v1107
  %v1109 = vrot.slane %v90, %v1108
  %v1111 = vsel %vm407, %v1094, 0
  %v1114 = vsel %vm407, %v1095, 0
  %v1117 = vsel %vm407, %v1096, 0
  %v1120 = vsel %vm407, %v1097, 0
  %v1123 = vsel %vm407, %v1098, 0
  %v1126 = vsel %vm407, %v1099, 0
  %v1129 = vsel %vm407, %v1100, 0
  %v1132 = vsel %vm407, %v1101, 0
  %1134 = vmatprep.subr.mxu0 0.0
  %1135 = vmatpush1.msra.mxu0 %v1102
  %1136 = vmatprep.subr.mxu0 0.0
  %1137 = vmatpush1.msra.mxu0 %v1103
  %1138 = vmatprep.subr.mxu0 0.0
  %1139 = vmatpush1.msra.mxu0 %v1104
  %1140 = vmatprep.subr.mxu0 0.0
  %1141 = vmatpush1.msra.mxu0 %v1105
  %1142 = vmatprep.subr.mxu0 0.0
  %1143 = vmatpush1.msra.mxu0 0.0
  %1144 = vmatprep.subr.mxu0 0.0
  %1145 = vmatpush1.msra.mxu0 0.0
  %1146 = vmatprep.subr.mxu0 0.0
  %1147 = vmatpush1.msra.mxu0 0.0
  %1148 = vmatprep.subr.mxu0 0.0
  %1149 = vmatpush1.msra.mxu0 0.0
  %1150 = vmatprep.subr.mxu0 0.0
  %1151 = vmatpush1.msra.mxu0 0.0
  %1152 = vmatprep.subr.mxu0 0.0
  %1153 = vmatpush1.msra.mxu0 0.0
  %1154 = vmatprep.subr.mxu0 0.0
  %1155 = vmatpush1.msra.mxu0 0.0
  %1156 = vmatprep.subr.mxu0 0.0
  %1157 = vmatpush1.msra.mxu0 0.0
  %1158 = vmatprep.subr.mxu0 0.0
  %1159 = vmatpush1.msra.mxu0 0.0
  %1160 = vmatprep.subr.mxu0 0.0
  %1161 = vmatpush1.msra.mxu0 0.0
  %1162 = vmatprep.subr.mxu0 0.0
  %1163 = vmatpush1.msra.mxu0 0.0
  %1164 = vmatprep.subr.mxu0 0.0
  %1165 = vmatpush1.msra.mxu0 0.0
  %1166 = vmatprep.subr.mxu0 0.0
  %1167 = vmatpush1.msra.mxu0 0.0
  %1168 = vmatprep.subr.mxu0 0.0
  %1169 = vmatpush1.msra.mxu0 0.0
  %1170 = vmatprep.subr.mxu0 0.0
  %1171 = vmatpush1.msra.mxu0 0.0
  %1172 = vmatprep.subr.mxu0 0.0
  %1173 = vmatpush1.msra.mxu0 0.0
  %1174 = vmatprep.subr.mxu0 0.0
  %1175 = vmatpush1.msra.mxu0 0.0
  %1176 = vmatprep.subr.mxu0 0.0
  %1177 = vmatpush1.msra.mxu0 0.0
  %1178 = vmatprep.subr.mxu0 0.0
  %1179 = vmatpush1.msra.mxu0 0.0
  %1180 = vmatprep.subr.mxu0 0.0
  %1181 = vmatpush1.msra.mxu0 0.0
  %1182 = vmatprep.subr.mxu0 0.0
  %1183 = vmatpush1.msra.mxu0 0.0
  %1184 = vmatprep.subr.mxu0 0.0
  %1185 = vmatpush1.msra.mxu0 0.0
  %1186 = vmatprep.subr.mxu0 0.0
  %1187 = vmatpush1.msra.mxu0 0.0
  %1188 = vmatprep.subr.mxu0 0.0
  %1189 = vmatpush1.msra.mxu0 0.0
  %1190 = vmatprep.subr.mxu0 0.0
  %1191 = vmatpush1.msra.mxu0 0.0
  %1192 = vmatprep.subr.mxu0 0.0
  %1193 = vmatpush1.msra.mxu0 0.0
  %1194 = vmatprep.subr.mxu0 0.0
  %1195 = vmatpush1.msra.mxu0 0.0
  %1196 = vmatprep.subr.mxu0 0.0
  %1197 = vmatpush1.msra.mxu0 0.0
  %1198 = vmatprep.mubr.f32.mxu0 0.0
  %1199 = vmatmul.mubr.f32.gmra.mrb[0].mxu0 %v1111
  %v1200 = vpop.f32.mrb[0].mxu0
  %v1201 = vadd.f32 %v1109, %v1200
  %v1202 = vpop.f32.mrb[0].mxu0
  %1203 = vmatprep.mubr.f32.mxu0 0.0
  %1204 = vmatmul.mubr.f32.gmra.mrb[0].mxu0 %v1114
  %v1205 = vpop.f32.mrb[0].mxu0
  %v1206 = vadd.f32 %v1109, %v1205
  %v1207 = vpop.f32.mrb[0].mxu0
  %1208 = vmatprep.mubr.f32.mxu0 0.0
  %1209 = vmatmul.mubr.f32.gmra.mrb[0].mxu0 %v1117
  %v1210 = vpop.f32.mrb[0].mxu0
  %v1211 = vadd.f32 %v1109, %v1210
  %v1212 = vpop.f32.mrb[0].mxu0
  %1213 = vmatprep.mubr.f32.mxu0 0.0
  %1214 = vmatmul.mubr.f32.gmra.mrb[0].mxu0 %v1120
  %v1215 = vpop.f32.mrb[0].mxu0
  %v1216 = vadd.f32 %v1109, %v1215
  %v1217 = vpop.f32.mrb[0].mxu0
  %1218 = vmatprep.mubr.f32.mxu0 0.0
  %1219 = vmatmul.mubr.f32.gmra.mrb[0].mxu0 %v1123
  %v1220 = vpop.f32.mrb[0].mxu0
  %v1221 = vadd.f32 %v1109, %v1220
  %v1222 = vpop.f32.mrb[0].mxu0
  %1223 = vmatprep.mubr.f32.mxu0 0.0
  %1224 = vmatmul.mubr.f32.gmra.mrb[0].mxu0 %v1126
  %v1225 = vpop.f32.mrb[0].mxu0
  %v1226 = vadd.f32 %v1109, %v1225
  %v1227 = vpop.f32.mrb[0].mxu0
  %1228 = vmatprep.mubr.f32.mxu0 0.0
  %1229 = vmatmul.mubr.f32.gmra.mrb[0].mxu0 %v1129
  %v1230 = vpop.f32.mrb[0].mxu0
  %v1231 = vadd.f32 %v1109, %v1230
  %v1232 = vpop.f32.mrb[0].mxu0
  %1233 = vmatprep.mubr.f32.mxu0 0.0
  %1234 = vmatmul.mubr.f32.gmra.mrb[0].mxu0 %v1132
  %v1235 = vpop.f32.mrb[0].mxu0
  %v1236 = vadd.f32 %v1109, %v1235
  %v1237 = vpop.f32.mrb[0].mxu0
  %1238 = vdwg.mxu0
  %v1239 = vmax.f32 %v1201, 0.0
  %v1240 = vmax.f32 %v1206, 0.0
  %v1241 = vmax.f32 %v1211, 0.0
  %v1242 = vmax.f32 %v1216, 0.0
  %v1243 = vmax.f32 %v1221, 0.0
  %v1244 = vmax.f32 %v1226, 0.0
  %v1245 = vmax.f32 %v1231, 0.0
  %v1246 = vmax.f32 %v1236, 0.0
  %1247 = vst [vmem:[%s7] sm:$0xff] %v1239
  %1248 = vst [vmem:[%s7 + $0x8] sm:$0xff] %v1240
  %1249 = vst [vmem:[%s7 + $0x10] sm:$0xff] %v1241
  %1250 = vst [vmem:[%s7 + $0x18] sm:$0xff] %v1242
  %1251 = vst [vmem:[%s7 + $0x20] sm:$0xff] %v1243
  %1252 = vst [vmem:[%s7 + $0x28] sm:$0xff] %v1244
  %1253 = vst [vmem:[%s7 + $0x30] sm:$0xff] %v1245
  %1254 = vst [vmem:[%s7 + $0x38] sm:$0xff] %v1246
  // Predicated region
  $region30: #{mpnn_forward.1} parent=0 // pred_check
    _
  $region31: #{mpnn_forward.1} parent=0 // pred_check_branch
    %1256 = sbr.rel (0) target = $region33
  $region32: #{mpnn_forward.1} parent=0 // pred_region
    _
  $region33: #{mpnn_forward.1} parent=0 // pred_fallthru
    _
  // Predicated region
  $region34: #{mpnn_forward.1} parent=0 // pred_check
    _
  $region35: #{mpnn_forward.1} parent=0 // pred_check_branch
    %1258 = sbr.rel (0) target = $region37
  $region36: #{mpnn_forward.1} parent=0 // pred_region
    _
  $region37: #{mpnn_forward.1} parent=0 // pred_fallthru
    _

</llo_original>
